<compile_context>
chip_gen: v6e
topology: v6e:2x2x1
jax: 0.10.0
libtpu: 0.0.40
codegen_flags: <defaults>
</compile_context>

<pallas_src>
import functools
import math

import jax
import jax.numpy as jnp
from jax.experimental import pallas as pl
from jax.experimental.pallas import tpu as pltpu


def _gelu_tanh(x):
    # tanh-approximation GELU (matches the custom GELU() class typically used
    # with this head).
    # TODO(synk): if the original GELU() is the exact erf variant, swap to
    # 0.5 * x * (1 + jax.lax.erf(x / sqrt(2))).
    c = math.sqrt(2.0 / math.pi)
    return 0.5 * x * (1.0 + jnp.tanh(c * (x + 0.044715 * x * x * x)))


def _round_up(x, m):
    return (x + m - 1) // m * m


def _head_kernel(x_ref, w1_ref, b1_ref, w2_ref, b2_ref, o_ref, h_ref):
    # Grid = (row_tiles, n_tiles); the N axis is innermost.
    # x_ref  : [tm, d_model]           (native dtype, feeds MXU directly)
    # w1_ref : [d_model, d_model], b1_ref : [1, d_model]
    # w2_ref : [d_model, tn],      b2_ref : [1, tn]
    # o_ref  : [tm, tn]
    # h_ref  : [tm, d_model] f32 scratch (GELU(Linear1(x))), reused across N.

    @pl.when(pl.program_id(1) == 0)
    def _():
        h = jnp.dot(x_ref[...], w1_ref[...], preferred_element_type=jnp.float32)
        h = h + b1_ref[...].astype(jnp.float32)
        h_ref[...] = _gelu_tanh(h)

    # Feed the second matmul in w2's dtype (bf16 path stays bf16 on the MXU).
    h = h_ref[...].astype(w2_ref.dtype)
    y = jnp.dot(h, w2_ref[...], preferred_element_type=jnp.float32)
    y = y + b2_ref[...].astype(jnp.float32)
    o_ref[...] = y.astype(o_ref.dtype)


@functools.partial(jax.jit, static_argnames=("row_tile",))
def linear_prediction_head(x, w1, b1, w2, b2, candidates=None, *, row_tile=256):
    """y = Linear2(GELU(Linear1(x))), optional gather along dim 1.

    x : [..., S, d_model]   (any leading dims; Linear acts on the last dim)
    w1: [d_model, d_model]  b1: [d_model]
    w2: [d_model, d_out]    b2: [d_out]
    candidates:
      * None                      -> full output [..., S, d_out]
      * [B, K]  (seq indices)     -> fast path: gather rows BEFORE the MLP
      * [B, K, d_out]             -> exact torch.gather(dim=1) semantics
    """
    d_model = x.shape[-1]
    d_out = w2.shape[-1]

    pre_gather = candidates is not None and candidates.ndim == x.ndim - 1
    if pre_gather:
        # Gather candidate sequence positions before the MLP: skips the two
        # matmuls for every non-candidate position.
        x = jnp.take_along_axis(x, candidates[..., None], axis=1)

    lead_shape = x.shape[:-1]
    x2d = x.reshape(-1, d_model)
    n_rows = x2d.shape[0]

    # ---- row tiling (pad internally, slice after) -------------------------
    tm = min(row_tile, _round_up(n_rows, 8))
    n_rows_p = _round_up(n_rows, tm)
    if n_rows_p != n_rows:
        x2d = jnp.pad(x2d, ((0, n_rows_p - n_rows), (0, 0)))

    # ---- output-dim tiling (lane-dense, multiple of 128) -------------------
    d_out_p = _round_up(d_out, 128)
    if d_out_p % 512 == 0:
        tn = 512
    elif d_out_p % 256 == 0:
        tn = 256
    else:
        tn = 128
    tn = min(tn, d_out_p)
    if d_out_p != d_out:
        w2 = jnp.pad(w2, ((0, 0), (0, d_out_p - d_out)))
        b2 = jnp.pad(b2.reshape(-1), (0, d_out_p - d_out))

    b1_2d = b1.reshape(1, d_model)
    b2_2d = b2.reshape(1, d_out_p)

    grid = (n_rows_p // tm, d_out_p // tn)

    itemsize = jnp.dtype(x.dtype).itemsize
    cost = pl.CostEstimate(
        flops=2 * n_rows_p * d_model * (d_model + d_out_p),
        transcendentals=n_rows_p * d_model,
        bytes_accessed=(
            x2d.size * x2d.dtype.itemsize
            + w1.size * w1.dtype.itemsize
            + b1_2d.size * b1_2d.dtype.itemsize
            + w2.size * w2.dtype.itemsize
            + b2_2d.size * b2_2d.dtype.itemsize
            + n_rows_p * d_out_p * itemsize
        ),
    )

    out = pl.pallas_call(
        _head_kernel,
        out_shape=jax.ShapeDtypeStruct((n_rows_p, d_out_p), x.dtype),
        grid_spec=pltpu.PrefetchScalarGridSpec(
            num_scalar_prefetch=0,
            grid=grid,
            in_specs=[
                pl.BlockSpec((tm, d_model), lambda i, n: (i, 0)),        # x
                pl.BlockSpec((d_model, d_model), lambda i, n: (0, 0)),   # w1
                pl.BlockSpec((1, d_model), lambda i, n: (0, 0)),         # b1
                pl.BlockSpec((d_model, tn), lambda i, n: (0, n)),        # w2 (streamed over N)
                pl.BlockSpec((1, tn), lambda i, n: (0, n)),              # b2
            ],
            out_specs=pl.BlockSpec((tm, tn), lambda i, n: (i, n)),
            scratch_shapes=[pltpu.VMEM((tm, d_model), jnp.float32)],     # h = GELU(Linear1(x))
        ),
        compiler_params=pltpu.CompilerParams(
            dimension_semantics=("parallel", "arbitrary"),
            vmem_limit_bytes=48 * 1024 * 1024,  # safe on v5e/v6e/v7x, above defaults
        ),
        cost_estimate=cost,
    )(x2d, w1, b1_2d, w2, b2_2d)

    out = out[:n_rows, :d_out].reshape(lead_shape + (d_out,))

    if candidates is not None and not pre_gather:
        # Exact torch.gather(x, 1, candidates) semantics (indices may vary
        # per output channel) -> gather after the MLP.
        out = jnp.take_along_axis(out, candidates, axis=1)
    return out


def _reference(x, w1, b1, w2, b2, candidates=None):
    xf = x.astype(jnp.float32)
    h = jnp.einsum("...d,de->...e", xf, w1.astype(jnp.float32)) + b1.astype(jnp.float32)
    h = _gelu_tanh(h)
    y = jnp.einsum("...d,de->...e", h, w2.astype(jnp.float32)) + b2.astype(jnp.float32)
    if candidates is not None:
        y = jnp.take_along_axis(y, candidates, axis=1)
    return y


if __name__ == "__main__":
    key = jax.random.PRNGKey(0)
    batch, seq, d_model, d_out = 2, 8, 32, 16

    k_x, k_w1, k_b1, k_w2, k_b2 = jax.random.split(key, 5)
    x = jax.random.normal(k_x, (batch, seq, d_model), dtype=jnp.float32)

    # PyTorch-Linear-like fan_in-bounded uniform init, deterministic.
    bound = 1.0 / math.sqrt(d_model)
    w1 = jax.random.uniform(k_w1, (d_model, d_model), jnp.float32, -bound, bound)
    b1 = jax.random.uniform(k_b1, (d_model,), jnp.float32, -bound, bound)
    w2 = jax.random.uniform(k_w2, (d_model, d_out), jnp.float32, -bound, bound)
    b2 = jax.random.uniform(k_b2, (d_out,), jnp.float32, -bound, bound)

    # 1) No-candidates path (candidates=None in the PyTorch forward).
    y = jax.block_until_ready(linear_prediction_head(x, w1, b1, w2, b2))
    y_ref = _reference(x, w1, b1, w2, b2)
    assert y.shape == (batch, seq, d_out), y.shape
    assert jnp.allclose(y, y_ref, atol=1e-5, rtol=1e-5), "mismatch vs reference"

    # 2) Exact torch.gather semantics: 3-D candidates, gather after the MLP.
    cand3d = jnp.tile(jnp.array([[1, 3, 5]], dtype=jnp.int32)[..., None],
                      (batch, 1, d_out))
    y_c = jax.block_until_ready(
        linear_prediction_head(x, w1, b1, w2, b2, candidates=cand3d))
    y_c_ref = _reference(x, w1, b1, w2, b2, candidates=cand3d)
    assert y_c.shape == (batch, 3, d_out), y_c.shape
    assert jnp.allclose(y_c, y_c_ref, atol=1e-5, rtol=1e-5), "gather mismatch"

    # 3) Fast path: 2-D candidates (whole sequence positions) gathered before
    #    the kernel; must match the post-gather reference.
    cand2d = jnp.tile(jnp.array([[1, 3, 5]], dtype=jnp.int32), (batch, 1))
    y_f = jax.block_until_ready(
        linear_prediction_head(x, w1, b1, w2, b2, candidates=cand2d))
    assert y_f.shape == (batch, 3, d_out), y_f.shape
    assert jnp.allclose(y_f, y_c_ref, atol=1e-5, rtol=1e-5), "pre-gather mismatch"

    # 4) bf16 path: operands feed the MXU natively in bf16, accumulate in f32.
    xb = x.astype(jnp.bfloat16)
    w1b, b1b = w1.astype(jnp.bfloat16), b1.astype(jnp.bfloat16)
    w2b, b2b = w2.astype(jnp.bfloat16), b2.astype(jnp.bfloat16)
    y_b = jax.block_until_ready(linear_prediction_head(xb, w1b, b1b, w2b, b2b))
    assert y_b.shape == (batch, seq, d_out), y_b.shape
    assert jnp.allclose(y_b.astype(jnp.float32), y_ref, atol=5e-2, rtol=5e-2), \
        "bf16 mismatch"

    print("KERNEL_OK")
</pallas_src>

<mosaic_0001>
module attributes {stable_mosaic.version = 11 : i64} {
  func.func @_head_kernel(%arg0: i32, %arg1: i32, %arg2: memref<16x32xf32, #tpu.memory_space<vmem>>, %arg3: memref<32x32xf32, #tpu.memory_space<vmem>>, %arg4: memref<1x32xf32, #tpu.memory_space<vmem>>, %arg5: memref<32x128xf32, #tpu.memory_space<vmem>>, %arg6: memref<1x128xf32, #tpu.memory_space<vmem>>, %arg7: memref<16x128xf32, #tpu.memory_space<vmem>>, %arg8: memref<16x32xf32, #tpu.memory_space<vmem>>) attributes {dimension_semantics = [#tpu.dimension_semantics<parallel>, #tpu.dimension_semantics<arbitrary>], iteration_bounds = array<i64: 1, 1>, scalar_prefetch = 0 : i64, scratch_operands = 1 : i64, tpu.core_type = #tpu.core_type<tc>, window_params = [{transform_indices = @transform_0, window_bounds = array<i64: 16, 32>}, {pipeline_mode = #tpu.pipeline_mode<synchronous>, transform_indices = @transform_1, window_bounds = array<i64: 32, 32>}, {pipeline_mode = #tpu.pipeline_mode<synchronous>, transform_indices = @transform_2, window_bounds = array<i64: 1, 32>}, {transform_indices = @transform_3, window_bounds = array<i64: 32, 128>}, {transform_indices = @transform_4, window_bounds = array<i64: 1, 128>}, {transform_indices = @transform_5, window_bounds = array<i64: 16, 128>}]} {
    %c0_i32 = arith.constant 0 : i32
    %0 = arith.cmpi eq, %arg1, %c0_i32 : i32
    %1 = arith.extui %0 : i1 to i32
    %c0_i32_0 = arith.constant 0 : i32
    %2 = arith.cmpi ne, %1, %c0_i32_0 : i32
    scf.if %2 {
      %c0_8 = arith.constant 0 : index
      %c0_9 = arith.constant 0 : index
      %10 = vector.load %arg2[%c0_8, %c0_9] : memref<16x32xf32, #tpu.memory_space<vmem>>, vector<16x32xf32>
      %c0_10 = arith.constant 0 : index
      %c0_11 = arith.constant 0 : index
      %11 = vector.load %arg3[%c0_10, %c0_11] : memref<32x32xf32, #tpu.memory_space<vmem>>, vector<32x32xf32>
      %cst_12 = arith.constant dense<0.000000e+00> : vector<16x32xf32>
      %12 = tpu.matmul %10, %11, %cst_12 {dimension_numbers = #tpu.dot_dimension_numbers<[1], [0], [0], [1], [0, 0, 1, 1], [], []>} : vector<16x32xf32>, vector<32x32xf32>, vector<16x32xf32> -> vector<16x32xf32>
      %c0_13 = arith.constant 0 : index
      %c0_14 = arith.constant 0 : index
      %13 = vector.load %arg4[%c0_13, %c0_14] : memref<1x32xf32, #tpu.memory_space<vmem>>, vector<1x32xf32>
      %14 = vector.broadcast %13 : vector<1x32xf32> to vector<16x32xf32>
      %15 = arith.addf %12, %14 : vector<16x32xf32>
      %cst_15 = arith.constant 5.000000e-01 : f32
      %16 = vector.broadcast %cst_15 : f32 to vector<16x32xf32>
      %17 = arith.mulf %16, %15 : vector<16x32xf32>
      %cst_16 = arith.constant 4.471500e-02 : f32
      %18 = vector.broadcast %cst_16 : f32 to vector<16x32xf32>
      %19 = arith.mulf %18, %15 : vector<16x32xf32>
      %20 = arith.mulf %19, %15 : vector<16x32xf32>
      %21 = arith.mulf %20, %15 : vector<16x32xf32>
      %22 = arith.addf %15, %21 : vector<16x32xf32>
      %cst_17 = arith.constant 0.797884583 : f32
      %23 = vector.broadcast %cst_17 : f32 to vector<16x32xf32>
      %24 = arith.mulf %23, %22 : vector<16x32xf32>
      %25 = math.tanh %24 : vector<16x32xf32>
      %cst_18 = arith.constant 1.000000e+00 : f32
      %26 = vector.broadcast %cst_18 : f32 to vector<16x32xf32>
      %27 = arith.addf %26, %25 : vector<16x32xf32>
      %28 = arith.mulf %17, %27 : vector<16x32xf32>
      %c0_19 = arith.constant 0 : index
      %c0_20 = arith.constant 0 : index
      %29 = vector.load %arg8[%c0_19, %c0_20] : memref<16x32xf32, #tpu.memory_space<vmem>>, vector<16x32xf32>
      tpu.vector_store %arg8[%c0_19, %c0_20], %28 {strides = array<i32>} : memref<16x32xf32, #tpu.memory_space<vmem>>, vector<16x32xf32>,
    } else {
    }
    %c0 = arith.constant 0 : index
    %c0_1 = arith.constant 0 : index
    %3 = vector.load %arg8[%c0, %c0_1] : memref<16x32xf32, #tpu.memory_space<vmem>>, vector<16x32xf32>
    %c0_2 = arith.constant 0 : index
    %c0_3 = arith.constant 0 : index
    %4 = vector.load %arg5[%c0_2, %c0_3] : memref<32x128xf32, #tpu.memory_space<vmem>>, vector<32x128xf32>
    %cst = arith.constant dense<0.000000e+00> : vector<16x128xf32>
    %5 = tpu.matmul %3, %4, %cst {dimension_numbers = #tpu.dot_dimension_numbers<[1], [0], [0], [1], [0, 0, 1, 1], [], []>} : vector<16x32xf32>, vector<32x128xf32>, vector<16x128xf32> -> vector<16x128xf32>
    %c0_4 = arith.constant 0 : index
    %c0_5 = arith.constant 0 : index
    %6 = vector.load %arg6[%c0_4, %c0_5] : memref<1x128xf32, #tpu.memory_space<vmem>>, vector<1x128xf32>
    %7 = vector.broadcast %6 : vector<1x128xf32> to vector<16x128xf32>
    %8 = arith.addf %5, %7 : vector<16x128xf32>
    %c0_6 = arith.constant 0 : index
    %c0_7 = arith.constant 0 : index
    %9 = vector.load %arg7[%c0_6, %c0_7] : memref<16x128xf32, #tpu.memory_space<vmem>>, vector<16x128xf32>
    tpu.vector_store %arg7[%c0_6, %c0_7], %8 {strides = array<i32>} : memref<16x128xf32, #tpu.memory_space<vmem>>, vector<16x128xf32>,
    return
  }
  func.func @transform_0(%arg0: i32, %arg1: i32) -> (i32, i32) {
    %c0_i32 = arith.constant 0 : i32
    %c0_i32_0 = arith.constant 0 : i32
    return %arg0, %c0_i32 : i32, i32
  }
  func.func @transform_1(%arg0: i32, %arg1: i32) -> (i32, i32) {
    %c0_i32 = arith.constant 0 : i32
    %c0_i32_0 = arith.constant 0 : i32
    %c0_i32_1 = arith.constant 0 : i32
    return %c0_i32, %c0_i32_0 : i32, i32
  }
  func.func @transform_2(%arg0: i32, %arg1: i32) -> (i32, i32) {
    %c0_i32 = arith.constant 0 : i32
    %c0_i32_0 = arith.constant 0 : i32
    %c0_i32_1 = arith.constant 0 : i32
    return %c0_i32, %c0_i32_0 : i32, i32
  }
  func.func @transform_3(%arg0: i32, %arg1: i32) -> (i32, i32) {
    %c0_i32 = arith.constant 0 : i32
    %c0_i32_0 = arith.constant 0 : i32
    return %c0_i32, %arg1 : i32, i32
  }
  func.func @transform_4(%arg0: i32, %arg1: i32) -> (i32, i32) {
    %c0_i32 = arith.constant 0 : i32
    %c0_i32_0 = arith.constant 0 : i32
    return %c0_i32, %arg1 : i32, i32
  }
  func.func @transform_5(%arg0: i32, %arg1: i32) -> (i32, i32) {
    %c0_i32 = arith.constant 0 : i32
    return %arg0, %arg1 : i32, i32
  }
}

</mosaic_0001>

<llo_original>
// kernel: linear_prediction_head.1
$region0: #{linear_prediction_head.1}
  #allocation0 [shape = 'u32[]', space=smem, size = 0x4, offset = 0x4, fixed_abs, tag = 'smem constant byte address 0x4 - core index']
  #allocation1 [shape = 'u32[144,128]{1,0:T(1,128)}', space=vmem, size = 0x12000, scoped, tag = 'internal scratch']
  #allocation2 [shape = 'f32[16,32]{1,0:T(8,128)}', space=vmem, size = 0x2000, scoped, tag = 'scratch operand']
  %s0 = inlined_call_operand.vmem [shape: f32[16,32], index: 0, kind: input, shape index: {}]
  %s1 = inlined_call_operand.vmem [shape: f32[32,32], index: 1, kind: input, shape index: {}]
  %s2 = inlined_call_operand.vmem [shape: f32[1,32], index: 2, kind: input, shape index: {}]
  %s3 = inlined_call_operand.vmem [shape: f32[32,128], index: 3, kind: input, shape index: {}]
  %s4 = inlined_call_operand.vmem [shape: f32[1,128], index: 4, kind: input, shape index: {}]
  %s5 = inlined_call_operand.vmem [shape: f32[16,128], index: 5, kind: output, shape index: {}]
  %s6 = sld [smem:[#allocation0]]
  $region34: #{linear_prediction_head.1} parent=0
    _
  %s8 = ssub.s32 1, %s6
  %s9 = scalar_select 0, %s8, %s6
  // Predicated region
  $region2: #{linear_prediction_head.1} parent=0 // pred_check
    _
  $region3: #{linear_prediction_head.1} parent=0 // pred_check_branch
    %11 = sbr.rel (0) target = $region5
  $region4: #{linear_prediction_head.1} parent=0 // pred_region
    _
  $region5: #{linear_prediction_head.1} parent=0 // pred_fallthru
    _
  // Predicated region
  $region6: #{linear_prediction_head.1} parent=0 // pred_check
    _
  $region7: #{linear_prediction_head.1} parent=0 // pred_check_branch
    %13 = sbr.rel (0) target = $region9
  $region8: #{linear_prediction_head.1} parent=0 // pred_region
    _
  $region9: #{linear_prediction_head.1} parent=0 // pred_fallthru
    _
  // Predicated region
  $region10: #{linear_prediction_head.1} parent=0 // pred_check
    _
  $region11: #{linear_prediction_head.1} parent=0 // pred_check_branch
    %15 = sbr.rel (0) target = $region13
  $region12: #{linear_prediction_head.1} parent=0 // pred_region
    _
  $region13: #{linear_prediction_head.1} parent=0 // pred_fallthru
    _
  // Predicated region
  $region14: #{linear_prediction_head.1} parent=0 // pred_check
    _
  $region15: #{linear_prediction_head.1} parent=0 // pred_check_branch
    %17 = sbr.rel (0) target = $region17
  $region16: #{linear_prediction_head.1} parent=0 // pred_region
    _
  $region17: #{linear_prediction_head.1} parent=0 // pred_fallthru
    _
  // Predicated region
  $region18: #{linear_prediction_head.1} parent=0 // pred_check
    _
  $region19: #{linear_prediction_head.1} parent=0 // pred_check_branch
    %19 = sbr.rel (0) target = $region21
  $region20: #{linear_prediction_head.1} parent=0 // pred_region
    _
  $region21: #{linear_prediction_head.1} parent=0 // pred_fallthru
    _
  %p20 = scmp.eq.s32.totalorder 0, 0
  // Predicated region
  $region22: #{linear_prediction_head.1} parent=0 // pred_check
    %p21 = pneg %p20
  $region23: #{linear_prediction_head.1} parent=0 // pred_check_branch
    %23 = sbr.rel (%p21) target = $region25
  $region24: #{linear_prediction_head.1} parent=0 // pred_region
    %v24 = vld [vmem:[%s0] sm:$0xff]
    %v25 = vld [vmem:[%s0 + $0x8] sm:$0xff]
    %v26 = vld [vmem:[%s1] sm:$0xff]
    %v27 = vld [vmem:[%s1 + $0x8] sm:$0xff]
    %v28 = vld [vmem:[%s1 + $0x10] sm:$0xff]
    %v29 = vld [vmem:[%s1 + $0x18] sm:$0xff]
    %v30 = vld [vmem:[%s2] sm:$0x1]
    %v32 = vlaneseq
    %v33 = vshrl.u32 %v32, 7
    %v34 = vsub.s32 0, %v33
    %v35 = vrot.slane %v30, %v34
    %vm37 = vcmask 261120
    %v39 = vsel %vm37, %v24, 0
    %v42 = vsel %vm37, %v25, 0
    %44 = vmatprep.subr.mxu0 0.0
    %45 = vmatpush1.msra.mxu0 0.0
    %46 = vmatprep.subr.mxu0 0.0
    %47 = vmatpush1.msra.mxu0 0.0
    %48 = vmatprep.subr.mxu0 0.0
    %49 = vmatpush1.msra.mxu0 0.0
    %50 = vmatprep.subr.mxu0 0.0
    %51 = vmatpush1.msra.mxu0 0.0
    %52 = vmatprep.subr.mxu0 0.0
    %53 = vmatpush1.msra.mxu0 0.0
    %54 = vmatprep.subr.mxu0 0.0
    %55 = vmatpush1.msra.mxu0 0.0
    %56 = vmatprep.subr.mxu0 0.0
    %57 = vmatpush1.msra.mxu0 0.0
    %58 = vmatprep.subr.mxu0 0.0
    %59 = vmatpush1.msra.mxu0 0.0
    %60 = vmatprep.subr.mxu0 0.0
    %61 = vmatpush1.msra.mxu0 0.0
    %62 = vmatprep.subr.mxu0 0.0
    %63 = vmatpush1.msra.mxu0 0.0
    %64 = vmatprep.subr.mxu0 0.0
    %65 = vmatpush1.msra.mxu0 0.0
    %66 = vmatprep.subr.mxu0 0.0
    %67 = vmatpush1.msra.mxu0 0.0
    %68 = vmatprep.subr.mxu0 0.0
    %69 = vmatpush1.msra.mxu0 %v29
    %70 = vmatprep.subr.mxu0 0.0
    %71 = vmatpush1.msra.mxu0 %v28
    %72 = vmatprep.subr.mxu0 0.0
    %73 = vmatpush1.msra.mxu0 %v27
    %74 = vmatprep.subr.mxu0 0.0
    %75 = vmatpush1.msra.mxu0 %v26
    %76 = vmatprep.subr.mxu0 0.0
    %77 = vmatpush2.msra.mxu0 0.0
    %78 = vmatprep.subr.mxu0 0.0
    %79 = vmatpush2.msra.mxu0 0.0
    %80 = vmatprep.subr.mxu0 0.0
    %81 = vmatpush2.msra.mxu0 0.0
    %82 = vmatprep.subr.mxu0 0.0
    %83 = vmatpush2.msra.mxu0 0.0
    %84 = vmatprep.subr.mxu0 0.0
    %85 = vmatpush2.msra.mxu0 0.0
    %86 = vmatprep.subr.mxu0 0.0
    %87 = vmatpush2.msra.mxu0 0.0
    %88 = vmatprep.subr.mxu0 0.0
    %89 = vmatpush2.msra.mxu0 0.0
    %90 = vmatprep.subr.mxu0 0.0
    %91 = vmatpush2.msra.mxu0 0.0
    %92 = vmatprep.subr.mxu0 0.0
    %93 = vmatpush2.msra.mxu0 0.0
    %94 = vmatprep.subr.mxu0 0.0
    %95 = vmatpush2.msra.mxu0 0.0
    %96 = vmatprep.subr.mxu0 0.0
    %97 = vmatpush2.msra.mxu0 0.0
    %98 = vmatprep.subr.mxu0 0.0
    %99 = vmatpush2.msra.mxu0 0.0
    %100 = vmatprep.subr.mxu0 0.0
    %101 = vmatpush2.msra.mxu0 0.0
    %102 = vmatprep.subr.mxu0 0.0
    %103 = vmatpush2.msra.mxu0 0.0
    %104 = vmatprep.subr.mxu0 0.0
    %105 = vmatpush2.msra.mxu0 0.0
    %106 = vmatprep.subr.mxu0 0.0
    %107 = vmatpush2.msra.mxu0 0.0
    %108 = vmatprep.mubr.f32.mxu0 0.0
    %109 = vmatmul.mubr.f32.gmra.mxu0 %v39
    %v110 = vpop.f32.mrf.mxu0
    %v111 = vadd.f32 %v35, %v110
    %v112 = vpop.f32.mrf.mxu0
    %113 = vmatprep.mubr.f32.mxu0 0.0
    %114 = vmatmul.mubr.f32.gmra.mxu0 %v42
    %v115 = vpop.f32.mrf.mxu0
    %v116 = vadd.f32 %v35, %v115
    %v117 = vpop.f32.mrf.mxu0
    %118 = vdwg.mxu0
    %v119 = vmul.f32 %v111, 0.5
    %v120 = vmul.f32 %v116, 0.5
    %v121 = vmul.f32 %v111, 0.044715
    %v122 = vmul.f32 %v116, 0.044715
    %v123 = vmul.f32 %v121, %v111
    %v124 = vmul.f32 %v122, %v116
    %v125 = vmul.f32 %v123, %v111
    %v126 = vmul.f32 %v124, %v116
    %v127 = vadd.f32 %v111, %v125
    %v128 = vadd.f32 %v116, %v126
    %v129 = vmul.f32 %v127, 0.7978846
    %v130 = vmul.f32 %v128, 0.7978846
    %v131 = vtanh.pop %v129
    %v132 = vtanh.pop %v130
    %v133 = vadd.f32 %v131, 1.0
    %v134 = vadd.f32 %v132, 1.0
    %v135 = vmul.f32 %v119, %v133
    %v136 = vmul.f32 %v120, %v134
    %137 = vst.msk [vmem:[#allocation2] sm:$0xff] %vm37, %v135
    %138 = vst.msk [vmem:[#allocation2 + $0x8] sm:$0xff] %vm37, %v136
  $region25: #{linear_prediction_head.1} parent=0 // pred_fallthru
    _
  %v139 = vld [vmem:[#allocation2] sm:$0xff]
  %v140 = vld [vmem:[#allocation2 + $0x8] sm:$0xff]
  %v141 = vld [vmem:[%s3] sm:$0xff]
  %v142 = vld [vmem:[%s3 + $0x8] sm:$0xff]
  %v143 = vld [vmem:[%s3 + $0x10] sm:$0xff]
  %v144 = vld [vmem:[%s3 + $0x18] sm:$0xff]
  %v145 = vld [vmem:[%s4] sm:$0x1]
  %v147 = vlaneseq
  %v148 = vshrl.u32 %v147, 7
  %v149 = vsub.s32 0, %v148
  %v150 = vrot.slane %v145, %v149
  %vm152 = vcmask 261120
  %v154 = vsel %vm152, %v139, 0
  %v157 = vsel %vm152, %v140, 0
  %159 = vmatprep.subr.mxu0 0.0
  %160 = vmatpush1.msra.mxu0 0.0
  %161 = vmatprep.subr.mxu0 0.0
  %162 = vmatpush1.msra.mxu0 0.0
  %163 = vmatprep.subr.mxu0 0.0
  %164 = vmatpush1.msra.mxu0 0.0
  %165 = vmatprep.subr.mxu0 0.0
  %166 = vmatpush1.msra.mxu0 0.0
  %167 = vmatprep.subr.mxu0 0.0
  %168 = vmatpush1.msra.mxu0 0.0
  %169 = vmatprep.subr.mxu0 0.0
  %170 = vmatpush1.msra.mxu0 0.0
  %171 = vmatprep.subr.mxu0 0.0
  %172 = vmatpush1.msra.mxu0 0.0
  %173 = vmatprep.subr.mxu0 0.0
  %174 = vmatpush1.msra.mxu0 0.0
  %175 = vmatprep.subr.mxu0 0.0
  %176 = vmatpush1.msra.mxu0 0.0
  %177 = vmatprep.subr.mxu0 0.0
  %178 = vmatpush1.msra.mxu0 0.0
  %179 = vmatprep.subr.mxu0 0.0
  %180 = vmatpush1.msra.mxu0 0.0
  %181 = vmatprep.subr.mxu0 0.0
  %182 = vmatpush1.msra.mxu0 0.0
  %183 = vmatprep.subr.mxu0 0.0
  %184 = vmatpush1.msra.mxu0 %v144
  %185 = vmatprep.subr.mxu0 0.0
  %186 = vmatpush1.msra.mxu0 %v143
  %187 = vmatprep.subr.mxu0 0.0
  %188 = vmatpush1.msra.mxu0 %v142
  %189 = vmatprep.subr.mxu0 0.0
  %190 = vmatpush1.msra.mxu0 %v141
  %191 = vmatprep.subr.mxu0 0.0
  %192 = vmatpush2.msra.mxu0 0.0
  %193 = vmatprep.subr.mxu0 0.0
  %194 = vmatpush2.msra.mxu0 0.0
  %195 = vmatprep.subr.mxu0 0.0
  %196 = vmatpush2.msra.mxu0 0.0
  %197 = vmatprep.subr.mxu0 0.0
  %198 = vmatpush2.msra.mxu0 0.0
  %199 = vmatprep.subr.mxu0 0.0
  %200 = vmatpush2.msra.mxu0 0.0
  %201 = vmatprep.subr.mxu0 0.0
  %202 = vmatpush2.msra.mxu0 0.0
  %203 = vmatprep.subr.mxu0 0.0
  %204 = vmatpush2.msra.mxu0 0.0
  %205 = vmatprep.subr.mxu0 0.0
  %206 = vmatpush2.msra.mxu0 0.0
  %207 = vmatprep.subr.mxu0 0.0
  %208 = vmatpush2.msra.mxu0 0.0
  %209 = vmatprep.subr.mxu0 0.0
  %210 = vmatpush2.msra.mxu0 0.0
  %211 = vmatprep.subr.mxu0 0.0
  %212 = vmatpush2.msra.mxu0 0.0
  %213 = vmatprep.subr.mxu0 0.0
  %214 = vmatpush2.msra.mxu0 0.0
  %215 = vmatprep.subr.mxu0 0.0
  %216 = vmatpush2.msra.mxu0 0.0
  %217 = vmatprep.subr.mxu0 0.0
  %218 = vmatpush2.msra.mxu0 0.0
  %219 = vmatprep.subr.mxu0 0.0
  %220 = vmatpush2.msra.mxu0 0.0
  %221 = vmatprep.subr.mxu0 0.0
  %222 = vmatpush2.msra.mxu0 0.0
  %223 = vmatprep.mubr.f32.mxu0 0.0
  %224 = vmatmul.mubr.f32.gmra.mxu0 %v154
  %v225 = vpop.f32.mrf.mxu0
  %v226 = vadd.f32 %v150, %v225
  %v227 = vpop.f32.mrf.mxu0
  %228 = vmatprep.mubr.f32.mxu0 0.0
  %229 = vmatmul.mubr.f32.gmra.mxu0 %v157
  %v230 = vpop.f32.mrf.mxu0
  %v231 = vadd.f32 %v150, %v230
  %v232 = vpop.f32.mrf.mxu0
  %233 = vdwg.mxu0
  %234 = vst [vmem:[%s5] sm:$0xff] %v226
  %235 = vst [vmem:[%s5 + $0x8] sm:$0xff] %v231
  // Predicated region
  $region26: #{linear_prediction_head.1} parent=0 // pred_check
    _
  $region27: #{linear_prediction_head.1} parent=0 // pred_check_branch
    %237 = sbr.rel (0) target = $region29
  $region28: #{linear_prediction_head.1} parent=0 // pred_region
    _
  $region29: #{linear_prediction_head.1} parent=0 // pred_fallthru
    _
  // Predicated region
  $region30: #{linear_prediction_head.1} parent=0 // pred_check
    _
  $region31: #{linear_prediction_head.1} parent=0 // pred_check_branch
    %239 = sbr.rel (0) target = $region33
  $region32: #{linear_prediction_head.1} parent=0 // pred_region
    _
  $region33: #{linear_prediction_head.1} parent=0 // pred_fallthru
    _

</llo_original>
